<compile_context>
chip_gen: v6e
topology: v6e:2x2x1
jax: 0.10.0
libtpu: 0.0.40
codegen_flags: <defaults>
</compile_context>

<pallas_src>
import functools

import jax
import jax.numpy as jnp
from jax.experimental import pallas as pl
from jax.experimental.pallas import tpu as pltpu


# ----------------------------------------------------------------------------
# In-kernel helper: sum_{b,i,k} (I - M_b M_b^T)_{ik}^2 for a (B, K, K) block,
# returned as (1, 1).  Uses ||I - G||_F^2 = K - 2*tr(G) + ||G||_F^2 with
# tr(G) = ||M||_F^2, so no eye/diff tensor is ever materialized.
# ----------------------------------------------------------------------------
def _frob_sumsq_11(m):
    m = m.astype(jnp.float32)
    b = m.shape[0]
    k = m.shape[-1]
    g = jnp.einsum('bij,bkj->bik', m, m, preferred_element_type=jnp.float32)
    tr = jnp.sum(jnp.sum(m * m, axis=0), keepdims=True)     # (1,1) = sum_b tr(G_b)
    gsq = jnp.sum(jnp.sum(g * g, axis=0), keepdims=True)    # (1,1) = sum_b ||G_b||^2
    return float(b * k) - 2.0 * tr + gsq


# ----------------------------------------------------------------------------
# Fused kernel.
#   refs = (params_smem, preds_tile, target_tile, [in_mtrx], [feat_mtrx],
#           out, [acc_scratch])
# Grid: (n_tiles,) over the flattened-row axis ("arbitrary" reduction).
# ----------------------------------------------------------------------------
def _fused_loss_kernel(*refs, n_tiles, tile_r, n_rows, mask_last,
                       inv_numel, inv_batch, has_in, has_feat):
    it = iter(refs)
    params_ref = next(it)                         # SMEM: [real_w, fake_w, alpha]
    preds_ref = next(it)                          # (tile_r, W) view of flat logits
    target_ref = next(it)
    in_ref = next(it) if has_in else None
    feat_ref = next(it) if has_feat else None
    out_ref = next(it)                            # (1, 1)
    acc_ref = next(it) if n_tiles > 1 else None   # VMEM (tile_r, W) f32

    i = pl.program_id(0)
    real_w = params_ref[0]
    fake_w = params_ref[1]
    alpha = params_ref[2]

    # --- weighted, numerically-stable BCE-with-logits for this tile ---------
    x = preds_ref[...].astype(jnp.float32)
    t = target_ref[...].astype(jnp.float32)
    w = t * real_w + (1.0 - t) * fake_w
    wl = w * (jnp.maximum(x, 0.0) - x * t + jnp.log1p(jnp.exp(-jnp.abs(x))))

    if n_tiles > 1:
        @pl.when(i == 0)
        def _init():
            acc_ref[...] = jnp.zeros_like(acc_ref)

        if mask_last:
            @pl.when(i < n_tiles - 1)
            def _accumulate():
                acc_ref[...] += wl                # pure VPU, no per-step reduce

            @pl.when(i == n_tiles - 1)
            def _accumulate_tail():
                row = (jax.lax.broadcasted_iota(jnp.int32, wl.shape, 0)
                       + i * tile_r)
                # Select (not multiply): OOB garbage may be NaN/Inf.
                acc_ref[...] += jnp.where(row < n_rows, wl, 0.0)
        else:
            acc_ref[...] += wl

    # --- finalize: single reduce + regularizers + scalar epilogue -----------
    @pl.when(i == n_tiles - 1)
    def _finalize():
        if n_tiles > 1:
            ce_sum = jnp.sum(acc_ref[...], keepdims=True)        # (1, 1)
        else:
            ce_sum = jnp.sum(wl, keepdims=True)                  # (1, 1)
        reg = jnp.zeros((1, 1), jnp.float32)
        if has_in:
            reg = reg + jnp.sqrt(_frob_sumsq_11(in_ref[...]))
        if has_feat:
            reg = reg + jnp.sqrt(_frob_sumsq_11(feat_ref[...]))
        out_ref[...] = ce_sum * inv_numel + (alpha * inv_batch) * reg


# ----------------------------------------------------------------------------
# Wrapper reproducing PointNetClassificationLoss.forward (is_softmax=False).
# ----------------------------------------------------------------------------
def pointnet_classification_loss(preds_tuple, target, *, real_weight=1.0,
                                 fake_weight=1.0, alpha=0.0001,
                                 tile_elems=512 * 1024):
    preds, in_mtrx, feat_mtrx = preds_tuple
    B, P = preds.shape
    N = B * P
    has_in = in_mtrx is not None
    has_feat = feat_mtrx is not None

    # Dtype-aware sublane multiple (8 for f32, 16 for bf16, 32 for int8/bool).
    row_mult = max(32 // jnp.dtype(preds.dtype).itemsize,
                   32 // jnp.dtype(target.dtype).itemsize, 8)

    # ---- lane+sublane-dense 2-D view of the flattened logits ---------------
    if N % 128 == 0:
        W = next(w for w in (1024, 512, 256, 128) if N % w == 0)
        R = N // W
        x2d = preds.reshape(R, W)        # free contiguous reshape
        t2d = target.reshape(R, W)
        # Row tiles from an element budget (~2 MiB f32 per input block).
        max_rows = max((tile_elems // W) // row_mult * row_mult, row_mult)
        if R <= max_rows:
            tile_r, n_tiles, mask_last = R, 1, False
        else:
            tile_r = max_rows
            n_tiles = -(-R // tile_r)
            mask_last = (R % tile_r) != 0
    else:
        # TODO(synk): rare ragged case (B*P not a multiple of 128) falls back
        # to a single full-array block; fine only for modest sizes.
        R, W = B, P
        x2d, t2d = preds, target
        tile_r, n_tiles, mask_last = R, 1, False

    params = jnp.array([real_weight, fake_weight, alpha], dtype=jnp.float32)

    in_specs = [
        pl.BlockSpec(memory_space=pltpu.MemorySpace.SMEM),           # params
        pl.BlockSpec((tile_r, W), lambda i: (i, 0)),                 # preds
        pl.BlockSpec((tile_r, W), lambda i: (i, 0)),                 # target
    ]
    args = [params, x2d, t2d]
    if has_in:
        bi, ki = in_mtrx.shape[0], in_mtrx.shape[-1]
        in_specs.append(pl.BlockSpec((bi, ki, ki), lambda i: (0, 0, 0)))
        args.append(in_mtrx)
    if has_feat:
        bf, kf = feat_mtrx.shape[0], feat_mtrx.shape[-1]
        in_specs.append(pl.BlockSpec((bf, kf, kf), lambda i: (0, 0, 0)))
        args.append(feat_mtrx)

    scratch_shapes = ([pltpu.VMEM((tile_r, W), jnp.float32)]
                      if n_tiles > 1 else [])

    kernel = functools.partial(
        _fused_loss_kernel,
        n_tiles=n_tiles, tile_r=tile_r, n_rows=R, mask_last=mask_last,
        inv_numel=1.0 / float(N), inv_batch=1.0 / float(B),
        has_in=has_in, has_feat=has_feat)

    out = pl.pallas_call(
        kernel,
        out_shape=jax.ShapeDtypeStruct((1, 1), jnp.float32),
        grid=(n_tiles,),
        in_specs=in_specs,
        out_specs=pl.BlockSpec((1, 1), lambda i: (0, 0)),
        scratch_shapes=scratch_shapes,
        compiler_params=pltpu.CompilerParams(
            dimension_semantics=("arbitrary",)),
    )(*args)
    return out[0, 0]


# ----------------------------------------------------------------------------
# Pure-JAX reference (matches the PyTorch module: torch.norm over the full
# (B,K,K) difference tensor == sqrt of the total sum of squares).
# ----------------------------------------------------------------------------
def _reference_loss(preds_tuple, target, *, real_weight=1.0, fake_weight=1.0,
                    alpha=0.0001):
    preds, in_mtrx, feat_mtrx = preds_tuple
    preds = preds.astype(jnp.float32)
    target = target.astype(jnp.float32)
    w = target * real_weight + (1.0 - target) * fake_weight
    elem = (jnp.maximum(preds, 0.0) - preds * target
            + jnp.log1p(jnp.exp(-jnp.abs(preds))))
    ce = jnp.mean(w * elem)

    def frob(m):
        m = m.astype(jnp.float32)
        eye = jnp.eye(m.shape[-1], dtype=jnp.float32)[None]
        diff = eye - jnp.einsum('bij,bkj->bik', m, m)
        return jnp.sqrt(jnp.sum(diff * diff))

    reg = jnp.float32(0.0)
    if in_mtrx is not None:
        reg = reg + frob(in_mtrx)
    if feat_mtrx is not None:
        reg = reg + frob(feat_mtrx)
    return ce + alpha * reg / float(preds.shape[0])


if __name__ == "__main__":
    keys = jax.random.split(jax.random.PRNGKey(0), 10)

    B, P = 2, 128
    K_IN, K_FEAT = 8, 32

    preds = jax.random.normal(keys[0], (B, P), dtype=jnp.float32)
    target = jax.random.bernoulli(keys[1], 0.5, (B, P)).astype(jnp.float32)
    in_mtrx = (jnp.eye(K_IN, dtype=jnp.float32)[None]
               + 0.05 * jax.random.normal(keys[2], (B, K_IN, K_IN), jnp.float32))
    feat_mtrx = (jnp.eye(K_FEAT, dtype=jnp.float32)[None]
                 + 0.05 * jax.random.normal(keys[3], (B, K_FEAT, K_FEAT),
                                            jnp.float32))

    def check(got, want, name):
        got = jax.block_until_ready(got)
        assert jnp.allclose(got, want, rtol=1e-5, atol=2e-5), (name, got, want)

    # 1) dense single-tile path, both transforms, non-unit weights
    loss1 = pointnet_classification_loss(
        (preds, in_mtrx, feat_mtrx), target,
        real_weight=2.0, fake_weight=0.5, alpha=0.0001)
    ref1 = _reference_loss((preds, in_mtrx, feat_mtrx), target,
                           real_weight=2.0, fake_weight=0.5, alpha=0.0001)
    check(loss1, ref1, "single-tile")

    # 2) multi-tile + masked ragged tail (N=5760 -> W=128, R=45, tile_r=32)
    P2 = 2880
    preds2 = jax.random.normal(keys[4], (B, P2), dtype=jnp.float32)
    target2 = jax.random.bernoulli(keys[5], 0.5, (B, P2)).astype(jnp.float32)
    loss2 = pointnet_classification_loss(
        (preds2, in_mtrx, feat_mtrx), target2, alpha=0.0001, tile_elems=4096)
    ref2 = _reference_loss((preds2, in_mtrx, feat_mtrx), target2, alpha=0.0001)
    check(loss2, ref2, "multi-tile-masked")

    # 3) multi-tile, exact tiling (no mask), in_mtrx=None, batch 4
    B3, P3 = 4, 16384
    preds3 = jax.random.normal(keys[6], (B3, P3), dtype=jnp.float32)
    target3 = jax.random.bernoulli(keys[7], 0.5, (B3, P3)).astype(jnp.float32)
    feat_mtrx3 = (jnp.eye(K_FEAT, dtype=jnp.float32)[None]
                  + 0.05 * jax.random.normal(keys[8], (B3, K_FEAT, K_FEAT),
                                             jnp.float32))
    loss3 = pointnet_classification_loss(
        (preds3, None, feat_mtrx3), target3, alpha=0.0001,
        tile_elems=32 * 1024)
    ref3 = _reference_loss((preds3, None, feat_mtrx3), target3, alpha=0.0001)
    check(loss3, ref3, "multi-tile-exact")

    # 4) bf16 logits/targets, upcast inside the kernel (HBM-byte reduction)
    preds_bf = preds.astype(jnp.bfloat16)
    target_bf = target.astype(jnp.bfloat16)
    loss4 = pointnet_classification_loss(
        (preds_bf, in_mtrx, feat_mtrx), target_bf,
        real_weight=2.0, fake_weight=0.5, alpha=0.0001)
    ref4 = _reference_loss((preds_bf, in_mtrx, feat_mtrx), target_bf,
                           real_weight=2.0, fake_weight=0.5, alpha=0.0001)
    check(loss4, ref4, "bf16-inputs")

    print("KERNEL_OK")
</pallas_src>

<mosaic_0001>
module attributes {stable_mosaic.version = 11 : i64} {
  func.func @_fused_loss_kernel(%arg0: i32, %arg1: memref<3xf32, #tpu.memory_space<smem>>, %arg2: memref<1x256xf32, #tpu.memory_space<vmem>>, %arg3: memref<1x256xf32, #tpu.memory_space<vmem>>, %arg4: memref<2x8x8xf32, #tpu.memory_space<vmem>>, %arg5: memref<2x32x32xf32, #tpu.memory_space<vmem>>, %arg6: memref<1x1xf32, #tpu.memory_space<vmem>>) attributes {dimension_semantics = [#tpu.dimension_semantics<arbitrary>], iteration_bounds = array<i64: 1>, scalar_prefetch = 0 : i64, scratch_operands = 0 : i64, tpu.core_type = #tpu.core_type<tc>, window_params = [{transform_indices = @transform_0, window_bounds = array<i64: 3>}, {transform_indices = @transform_1, window_bounds = array<i64: 1, 256>}, {transform_indices = @transform_2, window_bounds = array<i64: 1, 256>}, {pipeline_mode = #tpu.pipeline_mode<synchronous>, transform_indices = @transform_3, window_bounds = array<i64: 2, 8, 8>}, {pipeline_mode = #tpu.pipeline_mode<synchronous>, transform_indices = @transform_4, window_bounds = array<i64: 2, 32, 32>}, {pipeline_mode = #tpu.pipeline_mode<synchronous>, transform_indices = @transform_5, window_bounds = array<i64: 1, 1>}]} {
    %c0 = arith.constant 0 : index
    %0 = memref.load %arg1[%c0] : memref<3xf32, #tpu.memory_space<smem>>
    %c1 = arith.constant 1 : index
    %1 = memref.load %arg1[%c1] : memref<3xf32, #tpu.memory_space<smem>>
    %c2 = arith.constant 2 : index
    %2 = memref.load %arg1[%c2] : memref<3xf32, #tpu.memory_space<smem>>
    %c0_0 = arith.constant 0 : index
    %c0_1 = arith.constant 0 : index
    %3 = vector.load %arg2[%c0_0, %c0_1] : memref<1x256xf32, #tpu.memory_space<vmem>>, vector<1x256xf32>
    %c0_2 = arith.constant 0 : index
    %c0_3 = arith.constant 0 : index
    %4 = vector.load %arg3[%c0_2, %c0_3] : memref<1x256xf32, #tpu.memory_space<vmem>>, vector<1x256xf32>
    %5 = vector.broadcast %0 : f32 to vector<1x256xf32>
    %6 = arith.mulf %4, %5 : vector<1x256xf32>
    %cst = arith.constant 1.000000e+00 : f32
    %7 = vector.broadcast %cst : f32 to vector<1x256xf32>
    %8 = arith.subf %7, %4 : vector<1x256xf32>
    %9 = vector.broadcast %1 : f32 to vector<1x256xf32>
    %10 = arith.mulf %8, %9 : vector<1x256xf32>
    %11 = arith.addf %6, %10 : vector<1x256xf32>
    %cst_4 = arith.constant 0.000000e+00 : f32
    %12 = vector.broadcast %cst_4 : f32 to vector<1x256xf32>
    %13 = arith.maximumf %3, %12 : vector<1x256xf32>
    %14 = arith.mulf %3, %4 : vector<1x256xf32>
    %15 = arith.subf %13, %14 : vector<1x256xf32>
    %16 = math.absf %3 : vector<1x256xf32>
    %cst_5 = arith.constant 0.000000e+00 : f32
    %17 = vector.broadcast %cst_5 : f32 to vector<1x256xf32>
    %18 = arith.subf %17, %16 : vector<1x256xf32>
    %19 = math.exp %18 : vector<1x256xf32>
    %20 = math.log1p %19 : vector<1x256xf32>
    %21 = arith.addf %15, %20 : vector<1x256xf32>
    %22 = arith.mulf %11, %21 : vector<1x256xf32>
    %c0_i32 = arith.constant 0 : i32
    %23 = arith.cmpi eq, %arg0, %c0_i32 : i32
    %24 = arith.extui %23 : i1 to i32
    %c0_i32_6 = arith.constant 0 : i32
    %25 = arith.cmpi ne, %24, %c0_i32_6 : i32
    scf.if %25 {
      %26 = vector.shape_cast %22 : vector<1x256xf32> to vector<1x1x256xf32>
      %cst_7 = arith.constant dense<0.000000e+00> : vector<1xf32>
      %27 = vector.multi_reduction <add>, %26, %cst_7 [1, 2] : vector<1x1x256xf32> to vector<1xf32>
      %28 = vector.shape_cast %27 : vector<1xf32> to vector<1x1x1xf32>
      %29 = vector.extract %28[0, 0, 0] : f32 from vector<1x1x1xf32>
      %30 = vector.broadcast %29 : f32 to vector<1x1xf32>
      %cst_8 = arith.constant 0.000000e+00 : f32
      %31 = vector.broadcast %cst_8 : f32 to vector<1x1xf32>
      %c0_9 = arith.constant 0 : index
      %c0_10 = arith.constant 0 : index
      %c0_11 = arith.constant 0 : index
      %32 = vector.load %arg4[%c0_9, %c0_10, %c0_11] : memref<2x8x8xf32, #tpu.memory_space<vmem>>, vector<2x8x8xf32>
      "tpu.trace_start"() <{level = 10 : i32, message = "bij,bkj->bik"}> : () -> ()
      %cst_12 = arith.constant dense<0.000000e+00> : vector<2x8x8xf32>
      %33 = tpu.matmul %32, %32, %cst_12 {dimension_numbers = #tpu.dot_dimension_numbers<[2], [2], [1], [1], [0, 0, 0, 1, 1, 1], [0], [0]>} : vector<2x8x8xf32>, vector<2x8x8xf32>, vector<2x8x8xf32> -> vector<2x8x8xf32>
      "tpu.trace_stop"() : () -> ()
      %34 = arith.mulf %32, %32 : vector<2x8x8xf32>
      %cst_13 = arith.constant dense<0.000000e+00> : vector<8x8xf32>
      %35 = vector.multi_reduction <add>, %34, %cst_13 [0] : vector<2x8x8xf32> to vector<8x8xf32>
      %36 = vector.shape_cast %35 : vector<8x8xf32> to vector<1x8x8xf32>
      %cst_14 = arith.constant dense<0.000000e+00> : vector<1xf32>
      %37 = vector.multi_reduction <add>, %36, %cst_14 [1, 2] : vector<1x8x8xf32> to vector<1xf32>
      %38 = vector.shape_cast %37 : vector<1xf32> to vector<1x1x1xf32>
      %39 = vector.extract %38[0, 0, 0] : f32 from vector<1x1x1xf32>
      %40 = vector.broadcast %39 : f32 to vector<1x1xf32>
      %41 = arith.mulf %33, %33 : vector<2x8x8xf32>
      %cst_15 = arith.constant dense<0.000000e+00> : vector<8x8xf32>
      %42 = vector.multi_reduction <add>, %41, %cst_15 [0] : vector<2x8x8xf32> to vector<8x8xf32>
      %43 = vector.shape_cast %42 : vector<8x8xf32> to vector<1x8x8xf32>
      %cst_16 = arith.constant dense<0.000000e+00> : vector<1xf32>
      %44 = vector.multi_reduction <add>, %43, %cst_16 [1, 2] : vector<1x8x8xf32> to vector<1xf32>
      %45 = vector.shape_cast %44 : vector<1xf32> to vector<1x1x1xf32>
      %46 = vector.extract %45[0, 0, 0] : f32 from vector<1x1x1xf32>
      %47 = vector.broadcast %46 : f32 to vector<1x1xf32>
      %cst_17 = arith.constant 2.000000e+00 : f32
      %48 = vector.broadcast %cst_17 : f32 to vector<1x1xf32>
      %49 = arith.mulf %48, %40 : vector<1x1xf32>
      %cst_18 = arith.constant 1.600000e+01 : f32
      %50 = vector.broadcast %cst_18 : f32 to vector<1x1xf32>
      %51 = arith.subf %50, %49 : vector<1x1xf32>
      %52 = arith.addf %51, %47 : vector<1x1xf32>
      %53 = math.sqrt %52 : vector<1x1xf32>
      %54 = arith.addf %31, %53 : vector<1x1xf32>
      %c0_19 = arith.constant 0 : index
      %c0_20 = arith.constant 0 : index
      %c0_21 = arith.constant 0 : index
      %55 = vector.load %arg5[%c0_19, %c0_20, %c0_21] : memref<2x32x32xf32, #tpu.memory_space<vmem>>, vector<2x32x32xf32>
      "tpu.trace_start"() <{level = 10 : i32, message = "bij,bkj->bik"}> : () -> ()
      %cst_22 = arith.constant dense<0.000000e+00> : vector<2x32x32xf32>
      %56 = tpu.matmul %55, %55, %cst_22 {dimension_numbers = #tpu.dot_dimension_numbers<[2], [2], [1], [1], [0, 0, 0, 1, 1, 1], [0], [0]>} : vector<2x32x32xf32>, vector<2x32x32xf32>, vector<2x32x32xf32> -> vector<2x32x32xf32>
      "tpu.trace_stop"() : () -> ()
      %57 = arith.mulf %55, %55 : vector<2x32x32xf32>
      %cst_23 = arith.constant dense<0.000000e+00> : vector<32x32xf32>
      %58 = vector.multi_reduction <add>, %57, %cst_23 [0] : vector<2x32x32xf32> to vector<32x32xf32>
      %59 = vector.shape_cast %58 : vector<32x32xf32> to vector<1x32x32xf32>
      %cst_24 = arith.constant dense<0.000000e+00> : vector<1xf32>
      %60 = vector.multi_reduction <add>, %59, %cst_24 [1, 2] : vector<1x32x32xf32> to vector<1xf32>
      %61 = vector.shape_cast %60 : vector<1xf32> to vector<1x1x1xf32>
      %62 = vector.extract %61[0, 0, 0] : f32 from vector<1x1x1xf32>
      %63 = vector.broadcast %62 : f32 to vector<1x1xf32>
      %64 = arith.mulf %56, %56 : vector<2x32x32xf32>
      %cst_25 = arith.constant dense<0.000000e+00> : vector<32x32xf32>
      %65 = vector.multi_reduction <add>, %64, %cst_25 [0] : vector<2x32x32xf32> to vector<32x32xf32>
      %66 = vector.shape_cast %65 : vector<32x32xf32> to vector<1x32x32xf32>
      %cst_26 = arith.constant dense<0.000000e+00> : vector<1xf32>
      %67 = vector.multi_reduction <add>, %66, %cst_26 [1, 2] : vector<1x32x32xf32> to vector<1xf32>
      %68 = vector.shape_cast %67 : vector<1xf32> to vector<1x1x1xf32>
      %69 = vector.extract %68[0, 0, 0] : f32 from vector<1x1x1xf32>
      %70 = vector.broadcast %69 : f32 to vector<1x1xf32>
      %cst_27 = arith.constant 2.000000e+00 : f32
      %71 = vector.broadcast %cst_27 : f32 to vector<1x1xf32>
      %72 = arith.mulf %71, %63 : vector<1x1xf32>
      %cst_28 = arith.constant 6.400000e+01 : f32
      %73 = vector.broadcast %cst_28 : f32 to vector<1x1xf32>
      %74 = arith.subf %73, %72 : vector<1x1xf32>
      %75 = arith.addf %74, %70 : vector<1x1xf32>
      %76 = math.sqrt %75 : vector<1x1xf32>
      %77 = arith.addf %54, %76 : vector<1x1xf32>
      %cst_29 = arith.constant 3.906250e-03 : f32
      %78 = vector.broadcast %cst_29 : f32 to vector<1x1xf32>
      %79 = arith.mulf %30, %78 : vector<1x1xf32>
      %cst_30 = arith.constant 5.000000e-01 : f32
      %80 = arith.mulf %2, %cst_30 : f32
      %81 = vector.broadcast %80 : f32 to vector<1x1xf32>
      %82 = arith.mulf %81, %77 : vector<1x1xf32>
      %83 = arith.addf %79, %82 : vector<1x1xf32>
      %c0_31 = arith.constant 0 : index
      %c0_32 = arith.constant 0 : index
      %84 = vector.load %arg6[%c0_31, %c0_32] : memref<1x1xf32, #tpu.memory_space<vmem>>, vector<1x1xf32>
      tpu.vector_store %arg6[%c0_31, %c0_32], %83 {strides = array<i32>} : memref<1x1xf32, #tpu.memory_space<vmem>>, vector<1x1xf32>,
    } else {
    }
    return
  }
  func.func @transform_0(%arg0: i32) -> i32 {
    %c0_i32 = arith.constant 0 : i32
    %c0_i32_0 = arith.constant 0 : i32
    return %c0_i32 : i32
  }
  func.func @transform_1(%arg0: i32) -> (i32, i32) {
    %c0_i32 = arith.constant 0 : i32
    %c0_i32_0 = arith.constant 0 : i32
    return %arg0, %c0_i32 : i32, i32
  }
  func.func @transform_2(%arg0: i32) -> (i32, i32) {
    %c0_i32 = arith.constant 0 : i32
    %c0_i32_0 = arith.constant 0 : i32
    return %arg0, %c0_i32 : i32, i32
  }
  func.func @transform_3(%arg0: i32) -> (i32, i32, i32) {
    %c0_i32 = arith.constant 0 : i32
    %c0_i32_0 = arith.constant 0 : i32
    %c0_i32_1 = arith.constant 0 : i32
    %c0_i32_2 = arith.constant 0 : i32
    return %c0_i32, %c0_i32_0, %c0_i32_1 : i32, i32, i32
  }
  func.func @transform_4(%arg0: i32) -> (i32, i32, i32) {
    %c0_i32 = arith.constant 0 : i32
    %c0_i32_0 = arith.constant 0 : i32
    %c0_i32_1 = arith.constant 0 : i32
    %c0_i32_2 = arith.constant 0 : i32
    return %c0_i32, %c0_i32_0, %c0_i32_1 : i32, i32, i32
  }
  func.func @transform_5(%arg0: i32) -> (i32, i32) {
    %c0_i32 = arith.constant 0 : i32
    %c0_i32_0 = arith.constant 0 : i32
    %c0_i32_1 = arith.constant 0 : i32
    return %c0_i32, %c0_i32_0 : i32, i32
  }
}

</mosaic_0001>

<llo_original>
// kernel: tpu_custom_call.1
$region0: #{tpu_custom_call.1}
  #allocation0 [shape = 'u32[]', space=smem, size = 0x4, offset = 0x4, fixed_abs, tag = 'smem constant byte address 0x4 - core index']
  #allocation1 [shape = 'u32[144,128]{1,0:T(1,128)}', space=vmem, size = 0x12000, scoped, tag = 'internal scratch']
  %s0 = inlined_call_operand.hbm [shape: f32[3], index: 0, kind: input, shape index: {}]
  %s1 = inlined_call_operand.hbm [shape: f32[1,256], index: 1, kind: input, shape index: {}]
  %s2 = inlined_call_operand.vmem [shape: f32[1,256], index: 2, kind: input, shape index: {}]
  %s3 = inlined_call_operand.hbm [shape: f32[2,8,8], index: 3, kind: input, shape index: {}]
  %s4 = inlined_call_operand.hbm [shape: f32[2,32,32], index: 4, kind: input, shape index: {}]
  %s5 = inlined_call_operand.hbm [shape: f32[1,1], index: 5, kind: output, shape index: {}]
  %s6 = sld [smem:[#allocation0]]
  $region50: #{tpu_custom_call.1} parent=0
    _
  %s8 = ssub.s32 1, %s6
  %s9 = scalar_select 0, %s8, %s6
  $region1: #{tpu_custom_call.1} parent=0
    #allocation2 [shape = 'u8[512]{0}', space=smem, size = 0x200, scoped, tag = 'input window, operand 0, single buffered']
    #allocation3 [shape = 's32[1]{0}', space=sflag, size = 0x4, scoped, tag = 'scoped memory for tpu_custom_call.1']
    #allocation4 [shape = 's32[1]{0}', space=sflag, size = 0x4, scoped, tag = 'scoped memory for tpu_custom_call.1']
    #allocation5 [shape = 's32[1]{0}', space=sflag, size = 0x4, scoped, tag = 'scoped memory for tpu_custom_call.1']
    #allocation6 [shape = 'u8[1024]{0}', space=vmem, size = 0x400, scoped, tag = 'input window, operand 1, single buffered']
    #allocation7 [shape = 'u8[8192]{0}', space=vmem, size = 0x2000, scoped, tag = 'input window, operand 3, single buffered']
    #allocation8 [shape = 's32[1]{0}', space=sflag, size = 0x4, scoped, tag = 'scoped memory for tpu_custom_call.1']
    #allocation9 [shape = 'u8[32768]{0}', space=vmem, size = 0x8000, scoped, tag = 'input window, operand 4, single buffered']
    #allocation10 [shape = 'u8[512]{0}', space=vmem, size = 0x400, scoped, tag = 'output window, operand 0, single buffered']
    %10 = vsyncpa [#allocation5], 0
    %11 = vsyncpa [#allocation3], 0
    %12 = vsyncpa [#allocation8], 0
    %13 = vsyncpa [#allocation4], 0
    // Predicated region
    $region2: #{tpu_custom_call.1} parent=1 // pred_check
      _
    $region3: #{tpu_custom_call.1} parent=1 // pred_check_branch
      %15 = sbr.rel (0) target = $region5
    $region4: #{tpu_custom_call.1} parent=1 // pred_region
      %s17 = ssub.s32 16, 16
      %18 = vsyncadd [#allocation5], %s17
      %21 = dma.hbm_to_smem %s0, 16, [#allocation2], [#allocation5]
    $region5: #{tpu_custom_call.1} parent=1 // pred_fallthru
      _
    // Predicated region
    $region6: #{tpu_custom_call.1} parent=1 // pred_check
      _
    $region7: #{tpu_custom_call.1} parent=1 // pred_check_branch
      %23 = sbr.rel (0) target = $region9
    $region8: #{tpu_custom_call.1} parent=1 // pred_region
      %s25 = ssub.s32 32, 32
      %26 = vsyncadd [#allocation3], %s25
      %s28 = sshll.u32 [#allocation6], 4
      %s29 = int_to_ptr.vmem [resolvable:$true] %s28
      %31 = dma.hbm_to_vmem [thread:$0]  %s1, 32, %s29, [#allocation3]
    $region9: #{tpu_custom_call.1} parent=1 // pred_fallthru
      _
    // Predicated region
    $region10: #{tpu_custom_call.1} parent=1 // pred_check
      _
    $region11: #{tpu_custom_call.1} parent=1 // pred_check_branch
      %33 = sbr.rel (0) target = $region13
    $region12: #{tpu_custom_call.1} parent=1 // pred_region
      _
    $region13: #{tpu_custom_call.1} parent=1 // pred_fallthru
      _
    // Predicated region
    $region14: #{tpu_custom_call.1} parent=1 // pred_check
      _
    $region15: #{tpu_custom_call.1} parent=1 // pred_check_branch
      %35 = sbr.rel (0) target = $region17
    $region16: #{tpu_custom_call.1} parent=1 // pred_region
      %s37 = ssub.s32 256, 256
      %38 = vsyncadd [#allocation8], %s37
      %s39 = sshll.u32 [#allocation7], 4
      %s40 = int_to_ptr.vmem [resolvable:$true] %s39
      %45 = dma.hbm_to_vmem [thread:$0]  %s3, 256, %s40, [#allocation8], 128, 128, 8
    $region17: #{tpu_custom_call.1} parent=1 // pred_fallthru
      _
    // Predicated region
    $region18: #{tpu_custom_call.1} parent=1 // pred_check
      _
    $region19: #{tpu_custom_call.1} parent=1 // pred_check_branch
      %47 = sbr.rel (0) target = $region21
    $region20: #{tpu_custom_call.1} parent=1 // pred_region
      %s49 = ssub.s32 1024, 1024
      %50 = vsyncadd [#allocation8], %s49
      %s51 = sshll.u32 [#allocation9], 4
      %s52 = int_to_ptr.vmem [resolvable:$true] %s51
      %57 = dma.hbm_to_vmem [thread:$0]  %s4, 1024, %s52, [#allocation8], 128, 128, 8
    $region21: #{tpu_custom_call.1} parent=1 // pred_fallthru
      _
    // Predicated region
    $region22: #{tpu_custom_call.1} parent=1 // pred_check
      _
    $region23: #{tpu_custom_call.1} parent=1 // pred_check_branch
      %59 = sbr.rel (0) target = $region25
    $region24: #{tpu_custom_call.1} parent=1 // pred_region
      %60 = dma.done [#allocation5], 16
    $region25: #{tpu_custom_call.1} parent=1 // pred_fallthru
      _
    // Predicated region
    $region26: #{tpu_custom_call.1} parent=1 // pred_check
      _
    $region27: #{tpu_custom_call.1} parent=1 // pred_check_branch
      %62 = sbr.rel (0) target = $region29
    $region28: #{tpu_custom_call.1} parent=1 // pred_region
      %63 = dma.done [#allocation3], 32
    $region29: #{tpu_custom_call.1} parent=1 // pred_fallthru
      _
    // Predicated region
    $region30: #{tpu_custom_call.1} parent=1 // pred_check
      _
    $region31: #{tpu_custom_call.1} parent=1 // pred_check_branch
      %65 = sbr.rel (0) target = $region33
    $region32: #{tpu_custom_call.1} parent=1 // pred_region
      %66 = dma.done [#allocation8], 256
    $region33: #{tpu_custom_call.1} parent=1 // pred_fallthru
      _
    // Predicated region
    $region34: #{tpu_custom_call.1} parent=1 // pred_check
      _
    $region35: #{tpu_custom_call.1} parent=1 // pred_check_branch
      %68 = sbr.rel (0) target = $region37
    $region36: #{tpu_custom_call.1} parent=1 // pred_region
      %69 = dma.done [#allocation8], 1024
    $region37: #{tpu_custom_call.1} parent=1 // pred_fallthru
      _
    %70 = sfence
    %s71 = sld [smem:[#allocation2]]
    %s72 = sld [smem:[#allocation2 + $0x1]]
    %s73 = sld [smem:[#allocation2 + $0x2]]
    %v74 = vld [vmem:[#allocation6] sm:$0x3]
    %v75 = vld [vmem:[%s2] sm:$0x3]
    %v76 = vstv %s71
    %v77 = vmul.f32 %v75, %v76
    %v78 = vsub.f32 1.0, %v75
    %v79 = vstv %s72
    %v80 = vmul.f32 %v78, %v79
    %v81 = vadd.f32 %v77, %v80
    %v82 = vmax.f32 %v74, 0.0
    %v83 = vmul.f32 %v74, %v75
    %v84 = vsub.f32 %v82, %v83
    %v85 = vand.u32 2147483647, %v74
    %v86 = vsub.f32 0.0, %v85
    %v87 = vmul.f32 %v86, 1.442695
    %v88 = vpow.pop %v87
    %v89 = vadd.f32 %v88, 1.0
    %v90 = vlog2.pop %v89
    %v91 = vmul.f32 %v90, 0.6931472
    %v92 = vmul.f32 -0.5, %v88
    %v93 = vadd.f32 %v92, 1.0
    %v94 = vmul.f32 %v93, %v88
    %v95 = vand.u32 2147483647, %v88
    %vm96 = vcmp.lt.f32.partialorder %v95, 0.0004427343
    %v97 = vsel %vm96, %v94, %v91
    %v98 = vadd.f32 %v84, %v97
    %v99 = vmul.f32 %v81, %v98
    %p100 = scmp.eq.s32.totalorder 0, 0
    // Predicated region
    $region38: #{tpu_custom_call.1} parent=1 // pred_check
      %p101 = pneg %p100
    $region39: #{tpu_custom_call.1} parent=1 // pred_check_branch
      %103 = sbr.rel (%p101) target = $region41
    $region40: #{tpu_custom_call.1} parent=1 // pred_region
      %v105 = vlaneseq
      %v106 = vshrl.u32 %v105, 7
      %v107 = vsub.s32 0, %v106
      %v108 = vrot.slane %v99, %v107
      %v109 = vlaneseq
      %v110 = vshrl.u32 %v109, 7
      %v111 = vsub.s32 1, %v110
      %v112 = vrot.slane %v99, %v111
      %vm115 = vcmask 1040384
      %v116 = vsel %vm115, %v108, 0.0
      %v117 = vsel %vm115, %v112, 0.0
      %v118 = vadd.f32 %v116, %v117
      %119 = vadd.xlane.f32.xlu0 %v118
      %v120 = vpop.xlane.xlu0 %119
      %v121 = vrot.slane %v120, 4
      %v122 = vadd.f32 %v120, %v121
      %v123 = vrot.slane %v122, 2
      %v124 = vadd.f32 %v122, %v123
      %v125 = vrot.slane %v124, 1
      %v126 = vadd.f32 %v124, %v125
      %s127 = vtos %v126
      %v128 = vstv %s127
      %v129 = vld [vmem:[#allocation7] sm:$0xff]
      %v130 = vld [vmem:[#allocation7 + $0x8] sm:$0xff]
      %vm131 = vcmask 64512
      %v133 = vsel %vm131, %v129, 0
      %135 = vmatprep.subr.mxu0 0.0
      %136 = vmatpush1.xpose.msra.mxu0 0.0
      %137 = vmatprep.subr.mxu0 0.0
      %138 = vmatpush1.xpose.msra.mxu0 0.0
      %139 = vmatprep.subr.mxu0 0.0
      %140 = vmatpush1.xpose.msra.mxu0 0.0
      %141 = vmatprep.subr.mxu0 0.0
      %142 = vmatpush1.xpose.msra.mxu0 0.0
      %143 = vmatprep.subr.mxu0 0.0
      %144 = vmatpush1.xpose.msra.mxu0 0.0
      %145 = vmatprep.subr.mxu0 0.0
      %146 = vmatpush1.xpose.msra.mxu0 0.0
      %147 = vmatprep.subr.mxu0 0.0
      %148 = vmatpush1.xpose.msra.mxu0 0.0
      %149 = vmatprep.subr.mxu0 0.0
      %150 = vmatpush1.xpose.msra.mxu0 0.0
      %151 = vmatprep.subr.mxu0 0.0
      %152 = vmatpush1.xpose.msra.mxu0 0.0
      %153 = vmatprep.subr.mxu0 0.0
      %154 = vmatpush1.xpose.msra.mxu0 0.0
      %155 = vmatprep.subr.mxu0 0.0
      %156 = vmatpush1.xpose.msra.mxu0 0.0
      %157 = vmatprep.subr.mxu0 0.0
      %158 = vmatpush1.xpose.msra.mxu0 0.0
      %159 = vmatprep.subr.mxu0 0.0
      %160 = vmatpush1.xpose.msra.mxu0 0.0
      %161 = vmatprep.subr.mxu0 0.0
      %162 = vmatpush1.xpose.msra.mxu0 0.0
      %163 = vmatprep.subr.mxu0 0.0
      %164 = vmatpush1.xpose.msra.mxu0 0.0
      %165 = vmatprep.subr.mxu0 0.0
      %166 = vmatpush1.xpose.msra.mxu0 %v133
      %167 = vmatprep.subr.mxu0 0.0
      %168 = vmatpush2.xpose.msra.mxu0 0.0
      %169 = vmatprep.subr.mxu0 0.0
      %170 = vmatpush2.xpose.msra.mxu0 0.0
      %171 = vmatprep.subr.mxu0 0.0
      %172 = vmatpush2.xpose.msra.mxu0 0.0
      %173 = vmatprep.subr.mxu0 0.0
      %174 = vmatpush2.xpose.msra.mxu0 0.0
      %175 = vmatprep.subr.mxu0 0.0
      %176 = vmatpush2.xpose.msra.mxu0 0.0
      %177 = vmatprep.subr.mxu0 0.0
      %178 = vmatpush2.xpose.msra.mxu0 0.0
      %179 = vmatprep.subr.mxu0 0.0
      %180 = vmatpush2.xpose.msra.mxu0 0.0
      %181 = vmatprep.subr.mxu0 0.0
      %182 = vmatpush2.xpose.msra.mxu0 0.0
      %183 = vmatprep.subr.mxu0 0.0
      %184 = vmatpush2.xpose.msra.mxu0 0.0
      %185 = vmatprep.subr.mxu0 0.0
      %186 = vmatpush2.xpose.msra.mxu0 0.0
      %187 = vmatprep.subr.mxu0 0.0
      %188 = vmatpush2.xpose.msra.mxu0 0.0
      %189 = vmatprep.subr.mxu0 0.0
      %190 = vmatpush2.xpose.msra.mxu0 0.0
      %191 = vmatprep.subr.mxu0 0.0
      %192 = vmatpush2.xpose.msra.mxu0 0.0
      %193 = vmatprep.subr.mxu0 0.0
      %194 = vmatpush2.xpose.msra.mxu0 0.0
      %195 = vmatprep.subr.mxu0 0.0
      %196 = vmatpush2.xpose.msra.mxu0 0.0
      %197 = vmatprep.subr.mxu0 0.0
      %198 = vmatpush2.xpose.msra.mxu0 0.0
      %199 = vmatprep.mubr.f32.mxu0 0.0
      %200 = vmatmul.mubr.f32.gmra.mxu0 %v133
      %v201 = vpop.f32.mrf.mxu0
      %v202 = vadd.f32 0.0, %v201
      %v203 = vpop.f32.mrf.mxu0
      %204 = vdwg.mxu0
      %v206 = vsel %vm131, %v130, 0
      %208 = vmatprep.subr.mxu0 0.0
      %209 = vmatpush1.xpose.msra.mxu0 0.0
      %210 = vmatprep.subr.mxu0 0.0
      %211 = vmatpush1.xpose.msra.mxu0 0.0
      %212 = vmatprep.subr.mxu0 0.0
      %213 = vmatpush1.xpose.msra.mxu0 0.0
      %214 = vmatprep.subr.mxu0 0.0
      %215 = vmatpush1.xpose.msra.mxu0 0.0
      %216 = vmatprep.subr.mxu0 0.0
      %217 = vmatpush1.xpose.msra.mxu0 0.0
      %218 = vmatprep.subr.mxu0 0.0
      %219 = vmatpush1.xpose.msra.mxu0 0.0
      %220 = vmatprep.subr.mxu0 0.0
      %221 = vmatpush1.xpose.msra.mxu0 0.0
      %222 = vmatprep.subr.mxu0 0.0
      %223 = vmatpush1.xpose.msra.mxu0 0.0
      %224 = vmatprep.subr.mxu0 0.0
      %225 = vmatpush1.xpose.msra.mxu0 0.0
      %226 = vmatprep.subr.mxu0 0.0
      %227 = vmatpush1.xpose.msra.mxu0 0.0
      %228 = vmatprep.subr.mxu0 0.0
      %229 = vmatpush1.xpose.msra.mxu0 0.0
      %230 = vmatprep.subr.mxu0 0.0
      %231 = vmatpush1.xpose.msra.mxu0 0.0
      %232 = vmatprep.subr.mxu0 0.0
      %233 = vmatpush1.xpose.msra.mxu0 0.0
      %234 = vmatprep.subr.mxu0 0.0
      %235 = vmatpush1.xpose.msra.mxu0 0.0
      %236 = vmatprep.subr.mxu0 0.0
      %237 = vmatpush1.xpose.msra.mxu0 0.0
      %238 = vmatprep.subr.mxu0 0.0
      %239 = vmatpush1.xpose.msra.mxu0 %v206
      %240 = vmatprep.subr.mxu0 0.0
      %241 = vmatpush2.xpose.msra.mxu0 0.0
      %242 = vmatprep.subr.mxu0 0.0
      %243 = vmatpush2.xpose.msra.mxu0 0.0
      %244 = vmatprep.subr.mxu0 0.0
      %245 = vmatpush2.xpose.msra.mxu0 0.0
      %246 = vmatprep.subr.mxu0 0.0
      %247 = vmatpush2.xpose.msra.mxu0 0.0
      %248 = vmatprep.subr.mxu0 0.0
      %249 = vmatpush2.xpose.msra.mxu0 0.0
      %250 = vmatprep.subr.mxu0 0.0
      %251 = vmatpush2.xpose.msra.mxu0 0.0
      %252 = vmatprep.subr.mxu0 0.0
      %253 = vmatpush2.xpose.msra.mxu0 0.0
      %254 = vmatprep.subr.mxu0 0.0
      %255 = vmatpush2.xpose.msra.mxu0 0.0
      %256 = vmatprep.subr.mxu0 0.0
      %257 = vmatpush2.xpose.msra.mxu0 0.0
      %258 = vmatprep.subr.mxu0 0.0
      %259 = vmatpush2.xpose.msra.mxu0 0.0
      %260 = vmatprep.subr.mxu0 0.0
      %261 = vmatpush2.xpose.msra.mxu0 0.0
      %262 = vmatprep.subr.mxu0 0.0
      %263 = vmatpush2.xpose.msra.mxu0 0.0
      %264 = vmatprep.subr.mxu0 0.0
      %265 = vmatpush2.xpose.msra.mxu0 0.0
      %266 = vmatprep.subr.mxu0 0.0
      %267 = vmatpush2.xpose.msra.mxu0 0.0
      %268 = vmatprep.subr.mxu0 0.0
      %269 = vmatpush2.xpose.msra.mxu0 0.0
      %270 = vmatprep.subr.mxu0 0.0
      %271 = vmatpush2.xpose.msra.mxu0 0.0
      %272 = vmatprep.mubr.f32.mxu0 0.0
      %273 = vmatmul.mubr.f32.gmra.mxu0 %v206
      %v274 = vpop.f32.mrf.mxu0
      %v275 = vadd.f32 0.0, %v274
      %v276 = vpop.f32.mrf.mxu0
      %277 = vdwg.mxu0
      %v278 = vmul.f32 %v129, %v129
      %v279 = vmul.f32 %v130, %v130
      %v280 = vsel %vm131, %v278, 0.0
      %v281 = vsel %vm131, %v279, 0.0
      %v282 = vadd.f32 %v280, %v281
      %v283 = vsel %vm131, %v282, 0.0
      %284 = vadd.xlane.f32.xlu0 %v283
      %v285 = vpop.xlane.xlu0 %284
      %v286 = vrot.slane %v285, 4
      %v287 = vadd.f32 %v285, %v286
      %v288 = vrot.slane %v287, 2
      %v289 = vadd.f32 %v287, %v288
      %v290 = vrot.slane %v289, 1
      %v291 = vadd.f32 %v289, %v290
      %s292 = vtos %v291
      %v293 = vstv %s292
      %v294 = vmul.f32 %v202, %v202
      %v295 = vmul.f32 %v275, %v275
      %v296 = vsel %vm131, %v294, 0.0
      %v297 = vsel %vm131, %v295, 0.0
      %v298 = vadd.f32 %v296, %v297
      %v299 = vsel %vm131, %v298, 0.0
      %300 = vadd.xlane.f32.xlu0 %v299
      %v301 = vpop.xlane.xlu0 %300
      %v302 = vrot.slane %v301, 4
      %v303 = vadd.f32 %v301, %v302
      %v304 = vrot.slane %v303, 2
      %v305 = vadd.f32 %v303, %v304
      %v306 = vrot.slane %v305, 1
      %v307 = vadd.f32 %v305, %v306
      %s308 = vtos %v307
      %v309 = vstv %s308
      %v310 = vmul.f32 %v293, 2.0
      %v311 = vsub.f32 16.0, %v310
      %v312 = vadd.f32 %v311, %v309
      %v313 = vrsqrt.pop %v312
      %v314 = vmul.f32 %v312, %v313
      %vm315 = vcmp.eq.f32.partialorder %v312, inf
      %v316 = vsel %vm315, %v312, %v314
      %vm317 = vcmp.eq.f32.partialorder %v312, 0.0
      %v318 = vand.u32 %v312, 2147483648
      %v319 = vsel %vm317, %v318, %v316
      %v320 = vadd.f32 %v319, 0.0
      %v321 = vld [vmem:[#allocation9] sm:$0xff]
      %v322 = vld [vmem:[#allocation9 + $0x8] sm:$0xff]
      %v323 = vld [vmem:[#allocation9 + $0x10] sm:$0xff]
      %v324 = vld [vmem:[#allocation9 + $0x18] sm:$0xff]
      %v325 = vld [vmem:[#allocation9 + $0x20] sm:$0xff]
      %v326 = vld [vmem:[#allocation9 + $0x28] sm:$0xff]
      %v327 = vld [vmem:[#allocation9 + $0x30] sm:$0xff]
      %v328 = vld [vmem:[#allocation9 + $0x38] sm:$0xff]
      %vm329 = vcmask 261120
      %v331 = vsel %vm329, %v321, 0
      %v334 = vsel %vm329, %v322, 0
      %v337 = vsel %vm329, %v323, 0
      %v340 = vsel %vm329, %v324, 0
      %342 = vmatprep.subr.mxu0 0.0
      %343 = vmatpush1.xpose.msra.mxu0 0.0
      %344 = vmatprep.subr.mxu0 0.0
      %345 = vmatpush1.xpose.msra.mxu0 0.0
      %346 = vmatprep.subr.mxu0 0.0
      %347 = vmatpush1.xpose.msra.mxu0 0.0
      %348 = vmatprep.subr.mxu0 0.0
      %349 = vmatpush1.xpose.msra.mxu0 0.0
      %350 = vmatprep.subr.mxu0 0.0
      %351 = vmatpush1.xpose.msra.mxu0 0.0
      %352 = vmatprep.subr.mxu0 0.0
      %353 = vmatpush1.xpose.msra.mxu0 0.0
      %354 = vmatprep.subr.mxu0 0.0
      %355 = vmatpush1.xpose.msra.mxu0 0.0
      %356 = vmatprep.subr.mxu0 0.0
      %357 = vmatpush1.xpose.msra.mxu0 0.0
      %358 = vmatprep.subr.mxu0 0.0
      %359 = vmatpush1.xpose.msra.mxu0 0.0
      %360 = vmatprep.subr.mxu0 0.0
      %361 = vmatpush1.xpose.msra.mxu0 0.0
      %362 = vmatprep.subr.mxu0 0.0
      %363 = vmatpush1.xpose.msra.mxu0 0.0
      %364 = vmatprep.subr.mxu0 0.0
      %365 = vmatpush1.xpose.msra.mxu0 0.0
      %366 = vmatprep.subr.mxu0 0.0
      %367 = vmatpush1.xpose.msra.mxu0 %v340
      %368 = vmatprep.subr.mxu0 0.0
      %369 = vmatpush1.xpose.msra.mxu0 %v337
      %370 = vmatprep.subr.mxu0 0.0
      %371 = vmatpush1.xpose.msra.mxu0 %v334
      %372 = vmatprep.subr.mxu0 0.0
      %373 = vmatpush1.xpose.msra.mxu0 %v331
      %374 = vmatprep.subr.mxu0 0.0
      %375 = vmatpush2.xpose.msra.mxu0 0.0
      %376 = vmatprep.subr.mxu0 0.0
      %377 = vmatpush2.xpose.msra.mxu0 0.0
      %378 = vmatprep.subr.mxu0 0.0
      %379 = vmatpush2.xpose.msra.mxu0 0.0
      %380 = vmatprep.subr.mxu0 0.0
      %381 = vmatpush2.xpose.msra.mxu0 0.0
      %382 = vmatprep.subr.mxu0 0.0
      %383 = vmatpush2.xpose.msra.mxu0 0.0
      %384 = vmatprep.subr.mxu0 0.0
      %385 = vmatpush2.xpose.msra.mxu0 0.0
      %386 = vmatprep.subr.mxu0 0.0
      %387 = vmatpush2.xpose.msra.mxu0 0.0
      %388 = vmatprep.subr.mxu0 0.0
      %389 = vmatpush2.xpose.msra.mxu0 0.0
      %390 = vmatprep.subr.mxu0 0.0
      %391 = vmatpush2.xpose.msra.mxu0 0.0
      %392 = vmatprep.subr.mxu0 0.0
      %393 = vmatpush2.xpose.msra.mxu0 0.0
      %394 = vmatprep.subr.mxu0 0.0
      %395 = vmatpush2.xpose.msra.mxu0 0.0
      %396 = vmatprep.subr.mxu0 0.0
      %397 = vmatpush2.xpose.msra.mxu0 0.0
      %398 = vmatprep.subr.mxu0 0.0
      %399 = vmatpush2.xpose.msra.mxu0 0.0
      %400 = vmatprep.subr.mxu0 0.0
      %401 = vmatpush2.xpose.msra.mxu0 0.0
      %402 = vmatprep.subr.mxu0 0.0
      %403 = vmatpush2.xpose.msra.mxu0 0.0
      %404 = vmatprep.subr.mxu0 0.0
      %405 = vmatpush2.xpose.msra.mxu0 0.0
      %406 = vmatprep.mubr.f32.mxu0 0.0
      %407 = vmatmul.mubr.f32.gmra.mxu0 %v331
      %v408 = vpop.f32.mrf.mxu0
      %v409 = vadd.f32 0.0, %v408
      %v410 = vpop.f32.mrf.mxu0
      %411 = vmatprep.mubr.f32.mxu0 0.0
      %412 = vmatmul.mubr.f32.gmra.mxu0 %v334
      %v413 = vpop.f32.mrf.mxu0
      %v414 = vadd.f32 0.0, %v413
      %v415 = vpop.f32.mrf.mxu0
      %416 = vmatprep.mubr.f32.mxu0 0.0
      %417 = vmatmul.mubr.f32.gmra.mxu0 %v337
      %v418 = vpop.f32.mrf.mxu0
      %v419 = vadd.f32 0.0, %v418
      %v420 = vpop.f32.mrf.mxu0
      %421 = vmatprep.mubr.f32.mxu0 0.0
      %422 = vmatmul.mubr.f32.gmra.mxu0 %v340
      %v423 = vpop.f32.mrf.mxu0
      %v424 = vadd.f32 0.0, %v423
      %v425 = vpop.f32.mrf.mxu0
      %426 = vdwg.mxu0
      %v428 = vsel %vm329, %v325, 0
      %v431 = vsel %vm329, %v326, 0
      %v434 = vsel %vm329, %v327, 0
      %v437 = vsel %vm329, %v328, 0
      %439 = vmatprep.subr.mxu0 0.0
      %440 = vmatpush1.xpose.msra.mxu0 0.0
      %441 = vmatprep.subr.mxu0 0.0
      %442 = vmatpush1.xpose.msra.mxu0 0.0
      %443 = vmatprep.subr.mxu0 0.0
      %444 = vmatpush1.xpose.msra.mxu0 0.0
      %445 = vmatprep.subr.mxu0 0.0
      %446 = vmatpush1.xpose.msra.mxu0 0.0
      %447 = vmatprep.subr.mxu0 0.0
      %448 = vmatpush1.xpose.msra.mxu0 0.0
      %449 = vmatprep.subr.mxu0 0.0
      %450 = vmatpush1.xpose.msra.mxu0 0.0
      %451 = vmatprep.subr.mxu0 0.0
      %452 = vmatpush1.xpose.msra.mxu0 0.0
      %453 = vmatprep.subr.mxu0 0.0
      %454 = vmatpush1.xpose.msra.mxu0 0.0
      %455 = vmatprep.subr.mxu0 0.0
      %456 = vmatpush1.xpose.msra.mxu0 0.0
      %457 = vmatprep.subr.mxu0 0.0
      %458 = vmatpush1.xpose.msra.mxu0 0.0
      %459 = vmatprep.subr.mxu0 0.0
      %460 = vmatpush1.xpose.msra.mxu0 0.0
      %461 = vmatprep.subr.mxu0 0.0
      %462 = vmatpush1.xpose.msra.mxu0 0.0
      %463 = vmatprep.subr.mxu0 0.0
      %464 = vmatpush1.xpose.msra.mxu0 %v437
      %465 = vmatprep.subr.mxu0 0.0
      %466 = vmatpush1.xpose.msra.mxu0 %v434
      %467 = vmatprep.subr.mxu0 0.0
      %468 = vmatpush1.xpose.msra.mxu0 %v431
      %469 = vmatprep.subr.mxu0 0.0
      %470 = vmatpush1.xpose.msra.mxu0 %v428
      %471 = vmatprep.subr.mxu0 0.0
      %472 = vmatpush2.xpose.msra.mxu0 0.0
      %473 = vmatprep.subr.mxu0 0.0
      %474 = vmatpush2.xpose.msra.mxu0 0.0
      %475 = vmatprep.subr.mxu0 0.0
      %476 = vmatpush2.xpose.msra.mxu0 0.0
      %477 = vmatprep.subr.mxu0 0.0
      %478 = vmatpush2.xpose.msra.mxu0 0.0
      %479 = vmatprep.subr.mxu0 0.0
      %480 = vmatpush2.xpose.msra.mxu0 0.0
      %481 = vmatprep.subr.mxu0 0.0
      %482 = vmatpush2.xpose.msra.mxu0 0.0
      %483 = vmatprep.subr.mxu0 0.0
      %484 = vmatpush2.xpose.msra.mxu0 0.0
      %485 = vmatprep.subr.mxu0 0.0
      %486 = vmatpush2.xpose.msra.mxu0 0.0
      %487 = vmatprep.subr.mxu0 0.0
      %488 = vmatpush2.xpose.msra.mxu0 0.0
      %489 = vmatprep.subr.mxu0 0.0
      %490 = vmatpush2.xpose.msra.mxu0 0.0
      %491 = vmatprep.subr.mxu0 0.0
      %492 = vmatpush2.xpose.msra.mxu0 0.0
      %493 = vmatprep.subr.mxu0 0.0
      %494 = vmatpush2.xpose.msra.mxu0 0.0
      %495 = vmatprep.subr.mxu0 0.0
      %496 = vmatpush2.xpose.msra.mxu0 0.0
      %497 = vmatprep.subr.mxu0 0.0
      %498 = vmatpush2.xpose.msra.mxu0 0.0
      %499 = vmatprep.subr.mxu0 0.0
      %500 = vmatpush2.xpose.msra.mxu0 0.0
      %501 = vmatprep.subr.mxu0 0.0
      %502 = vmatpush2.xpose.msra.mxu0 0.0
      %503 = vmatprep.mubr.f32.mxu0 0.0
      %504 = vmatmul.mubr.f32.gmra.mxu0 %v428
      %v505 = vpop.f32.mrf.mxu0
      %v506 = vadd.f32 0.0, %v505
      %v507 = vpop.f32.mrf.mxu0
      %508 = vmatprep.mubr.f32.mxu0 0.0
      %509 = vmatmul.mubr.f32.gmra.mxu0 %v431
      %v510 = vpop.f32.mrf.mxu0
      %v511 = vadd.f32 0.0, %v510
      %v512 = vpop.f32.mrf.mxu0
      %513 = vmatprep.mubr.f32.mxu0 0.0
      %514 = vmatmul.mubr.f32.gmra.mxu0 %v434
      %v515 = vpop.f32.mrf.mxu0
      %v516 = vadd.f32 0.0, %v515
      %v517 = vpop.f32.mrf.mxu0
      %518 = vmatprep.mubr.f32.mxu0 0.0
      %519 = vmatmul.mubr.f32.gmra.mxu0 %v437
      %v520 = vpop.f32.mrf.mxu0
      %v521 = vadd.f32 0.0, %v520
      %v522 = vpop.f32.mrf.mxu0
      %523 = vdwg.mxu0
      %v524 = vmul.f32 %v321, %v321
      %v525 = vmul.f32 %v322, %v322
      %v526 = vmul.f32 %v323, %v323
      %v527 = vmul.f32 %v324, %v324
      %v528 = vmul.f32 %v325, %v325
      %v529 = vmul.f32 %v326, %v326
      %v530 = vmul.f32 %v327, %v327
      %v531 = vmul.f32 %v328, %v328
      %v532 = vsel %vm329, %v524, 0.0
      %v533 = vsel %vm329, %v528, 0.0
      %v534 = vadd.f32 %v532, %v533
      %v535 = vsel %vm329, %v525, 0.0
      %v536 = vsel %vm329, %v529, 0.0
      %v537 = vadd.f32 %v535, %v536
      %v538 = vsel %vm329, %v526, 0.0
      %v539 = vsel %vm329, %v530, 0.0
      %v540 = vadd.f32 %v538, %v539
      %v541 = vsel %vm329, %v527, 0.0
      %v542 = vsel %vm329, %v531, 0.0
      %v543 = vadd.f32 %v541, %v542
      %v544 = vsel %vm329, %v534, 0.0
      %v545 = vsel %vm329, %v537, 0.0
      %v546 = vadd.f32 %v544, %v545
      %v547 = vsel %vm329, %v540, 0.0
      %v548 = vadd.f32 %v546, %v547
      %v549 = vsel %vm329, %v543, 0.0
      %v550 = vadd.f32 %v548, %v549
      %551 = vadd.xlane.f32.xlu0 %v550
      %v552 = vpop.xlane.xlu0 %551
      %v553 = vrot.slane %v552, 4
      %v554 = vadd.f32 %v552, %v553
      %v555 = vrot.slane %v554, 2
      %v556 = vadd.f32 %v554, %v555
      %v557 = vrot.slane %v556, 1
      %v558 = vadd.f32 %v556, %v557
      %s559 = vtos %v558
      %v560 = vstv %s559
      %v561 = vmul.f32 %v409, %v409
      %v562 = vmul.f32 %v414, %v414
      %v563 = vmul.f32 %v419, %v419
      %v564 = vmul.f32 %v424, %v424
      %v565 = vmul.f32 %v506, %v506
      %v566 = vmul.f32 %v511, %v511
      %v567 = vmul.f32 %v516, %v516
      %v568 = vmul.f32 %v521, %v521
      %v569 = vsel %vm329, %v561, 0.0
      %v570 = vsel %vm329, %v565, 0.0
      %v571 = vadd.f32 %v569, %v570
      %v572 = vsel %vm329, %v562, 0.0
      %v573 = vsel %vm329, %v566, 0.0
      %v574 = vadd.f32 %v572, %v573
      %v575 = vsel %vm329, %v563, 0.0
      %v576 = vsel %vm329, %v567, 0.0
      %v577 = vadd.f32 %v575, %v576
      %v578 = vsel %vm329, %v564, 0.0
      %v579 = vsel %vm329, %v568, 0.0
      %v580 = vadd.f32 %v578, %v579
      %v581 = vsel %vm329, %v571, 0.0
      %v582 = vsel %vm329, %v574, 0.0
      %v583 = vadd.f32 %v581, %v582
      %v584 = vsel %vm329, %v577, 0.0
      %v585 = vadd.f32 %v583, %v584
      %v586 = vsel %vm329, %v580, 0.0
      %v587 = vadd.f32 %v585, %v586
      %588 = vadd.xlane.f32.xlu0 %v587
      %v589 = vpop.xlane.xlu0 %588
      %v590 = vrot.slane %v589, 4
      %v591 = vadd.f32 %v589, %v590
      %v592 = vrot.slane %v591, 2
      %v593 = vadd.f32 %v591, %v592
      %v594 = vrot.slane %v593, 1
      %v595 = vadd.f32 %v593, %v594
      %s596 = vtos %v595
      %v597 = vstv %s596
      %v598 = vmul.f32 %v560, 2.0
      %v599 = vsub.f32 64.0, %v598
      %v600 = vadd.f32 %v599, %v597
      %v601 = vrsqrt.pop %v600
      %v602 = vmul.f32 %v600, %v601
      %vm603 = vcmp.eq.f32.partialorder %v600, inf
      %v604 = vsel %vm603, %v600, %v602
      %vm605 = vcmp.eq.f32.partialorder %v600, 0.0
      %v606 = vand.u32 %v600, 2147483648
      %v607 = vsel %vm605, %v606, %v604
      %v608 = vadd.f32 %v320, %v607
      %v609 = vmul.f32 %v128, 0.00390625
      %s610 = smul.f32 %s73, 0.5
      %v611 = vstv %s610
      %v612 = vmul.f32 %v611, %v608
      %v613 = vadd.f32 %v609, %v612
      %vm614 = vcmask 0
      %615 = vst.msk [vmem:[#allocation10] sm:$0x1] %vm614, %v613
    $region41: #{tpu_custom_call.1} parent=1 // pred_fallthru
      _
    // Predicated region
    $region42: #{tpu_custom_call.1} parent=1 // pred_check
      _
    $region43: #{tpu_custom_call.1} parent=1 // pred_check_branch
      %617 = sbr.rel (0) target = $region45
    $region44: #{tpu_custom_call.1} parent=1 // pred_region
      %s619 = ssub.s32 16, 16
      %620 = vsyncadd [#allocation4], %s619
      %s622 = sshll.u32 [#allocation10], 4
      %s623 = int_to_ptr.vmem [resolvable:$true] %s622
      %625 = dma.vmem_to_hbm [thread:$0]  %s623, 16, %s5, [#allocation4]
    $region45: #{tpu_custom_call.1} parent=1 // pred_fallthru
      _
    // Predicated region
    $region46: #{tpu_custom_call.1} parent=1 // pred_check
      _
    $region47: #{tpu_custom_call.1} parent=1 // pred_check_branch
      %627 = sbr.rel (0) target = $region49
    $region48: #{tpu_custom_call.1} parent=1 // pred_region
      %628 = dma.done [#allocation4], 16
    $region49: #{tpu_custom_call.1} parent=1 // pred_fallthru
      _
    %629 = vsyncpa [#allocation3], 1
    %630 = vsyncpa [#allocation8], 1
    %631 = vsyncpa [#allocation4], 1
    %632 = vsyncpa [#allocation5], 1

</llo_original>
